<compile_context>
chip_gen: v5e
topology: v5e:2x2
jax: 0.10.0
libtpu: 0.0.40
codegen_flags: <defaults>
</compile_context>

<pallas_src>
import jax
import jax.numpy as jnp
from jax.experimental import pallas as pl
from jax.experimental.pallas import tpu as pltpu


# Row offsets of each weight matrix inside the (72, 128) parameter slab.
# Every start is a multiple of 8 so ref slices are sublane-aligned.
_W_ROWS = ((0, 5, 8), (8, 8, 16), (16, 16, 32), (32, 32, 56))  # (row0, fin, fout)
_VEC_ROW0 = 64  # rows 64..70 hold g1, be1, g2, be2, g3, be3, b4


def _generator_kernel(z_ref, p_ref, out_ref):
    """Whole forward pass for one (small) batch, fully resident in VMEM."""
    eps = jnp.float32(0.8)
    slope = jnp.float32(0.2)

    def bn(x, g, be):
        # Training-mode BN with batch statistics, folded into a scale row.
        mean = jnp.mean(x, axis=0, keepdims=True)             # (1, F)
        xc = x - mean                                         # (B, F)
        var = jnp.mean(xc * xc, axis=0, keepdims=True)        # (1, F) biased
        scale = g * jax.lax.rsqrt(var + eps)                  # (1, F)
        return xc * scale + be                                # (B, F)

    def lrelu(x):
        return jnp.maximum(x, slope * x)

    # Weight matrices: 8-aligned ref slices (no full-slab materialization).
    w1 = p_ref[0:8,   0:8]      # rows 5-7 are zero (K padded to 8)
    w2 = p_ref[8:16,  0:16]
    w3 = p_ref[16:32, 0:32]
    w4 = p_ref[32:64, 0:128]    # cols 56-127 are zero (lane-dense output)

    # Row-vectors: one aligned (8,128) vreg load, then cheap sublane slices.
    vrows = p_ref[_VEC_ROW0:_VEC_ROW0 + 8, 0:128]
    g1, be1 = vrows[0:1, 0:8],  vrows[1:2, 0:8]
    g2, be2 = vrows[2:3, 0:16], vrows[3:4, 0:16]
    g3, be3 = vrows[4:5, 0:32], vrows[5:6, 0:32]
    b4 = vrows[6:7, 0:128]      # cols 56-127 are zero

    x = z_ref[...].astype(jnp.float32)                        # (B, 8), cols 5-7 zero

    # Note: b1-b3 are omitted on purpose; batch-stat BN cancels them exactly.
    h = lrelu(bn(jnp.dot(x, w1, preferred_element_type=jnp.float32), g1, be1))  # (B, 8)
    h = lrelu(bn(jnp.dot(h, w2, preferred_element_type=jnp.float32), g2, be2))  # (B, 16)
    h = lrelu(bn(jnp.dot(h, w3, preferred_element_type=jnp.float32), g3, be3))  # (B, 32)
    img = jnp.tanh(jnp.dot(h, w4, preferred_element_type=jnp.float32) + b4)     # (B, 128)

    # Lane-dense store; columns 56-127 are tanh(0) = 0 and are sliced off
    # by the wrapper.
    out_ref[...] = img.astype(out_ref.dtype)


@jax.jit
def generator_forward(z, pslab):
    """z: (B, 5) latent; pslab: (72, 128) packed params. Returns (B, 56)."""
    batch = z.shape[0]
    # Zero-pad the latent to 8 features so the first matmul has an aligned K.
    z8 = jnp.pad(z.astype(jnp.float32), ((0, 0), (0, 8 - z.shape[1])))
    vmem = pl.BlockSpec(memory_space=pltpu.MemorySpace.VMEM)
    out = pl.pallas_call(
        _generator_kernel,
        out_shape=jax.ShapeDtypeStruct((batch, 128), jnp.float32),
        in_specs=[vmem, vmem],
        out_specs=vmem,
    )(z8, pslab)
    # TODO(synk): emit bf16 here if downstream tolerates it (halves writeback).
    return out[:, :56]


def init_params(key):
    """PyTorch-default init (uniform +/-1/sqrt(fan_in); BN gamma=1, beta=0).
    Linear weights stored transposed as (in, out)."""
    dims = [(5, 8), (8, 16), (16, 32), (32, 56)]
    keys = jax.random.split(key, 2 * len(dims))
    params = []
    for idx, (fin, fout) in enumerate(dims):
        bound = 1.0 / (fin ** 0.5)
        w = jax.random.uniform(keys[2 * idx], (fin, fout), jnp.float32,
                               minval=-bound, maxval=bound)
        b = jax.random.uniform(keys[2 * idx + 1], (1, fout), jnp.float32,
                               minval=-bound, maxval=bound)
        params.append(w)
        params.append(b)
        if idx < 3:                                   # blocks 1-3 have BatchNorm1d
            params.append(jnp.ones((1, fout), jnp.float32))    # gamma
            params.append(jnp.zeros((1, fout), jnp.float32))   # beta
    return tuple(params)


def pack_params(params):
    """Pack the 14 PyTorch-style tensors into ONE (72,128) TPU-friendly slab.
    b1-b3 are intentionally NOT packed: they are exactly cancelled by
    training-mode (batch-statistic) BatchNorm. Do not reuse this slab with
    eval-mode / running-stat BN."""
    (w1, b1, g1, be1, w2, b2, g2, be2, w3, b3, g3, be3, w4, b4) = params
    del b1, b2, b3

    pslab = jnp.zeros((72, 128), jnp.float32)
    for (row0, fin, fout), w in zip(_W_ROWS, (w1, w2, w3, w4)):
        pslab = pslab.at[row0:row0 + fin, 0:fout].set(w)

    pslab = pslab.at[_VEC_ROW0 + 0, 0:8].set(g1[0])
    pslab = pslab.at[_VEC_ROW0 + 1, 0:8].set(be1[0])
    pslab = pslab.at[_VEC_ROW0 + 2, 0:16].set(g2[0])
    pslab = pslab.at[_VEC_ROW0 + 3, 0:16].set(be2[0])
    pslab = pslab.at[_VEC_ROW0 + 4, 0:32].set(g3[0])
    pslab = pslab.at[_VEC_ROW0 + 5, 0:32].set(be3[0])
    pslab = pslab.at[_VEC_ROW0 + 6, 0:56].set(b4[0])
    return pslab


def reference_forward(z, params):
    """Pure-JAX reference (keeps the linear biases b1-b3, unlike the kernel)."""
    (w1, b1, g1, be1, w2, b2, g2, be2, w3, b3, g3, be3, w4, b4) = params

    def bn(x, g, be, eps=0.8):
        m = jnp.mean(x, axis=0, keepdims=True)
        v = jnp.mean((x - m) ** 2, axis=0, keepdims=True)
        return (x - m) / jnp.sqrt(v + eps) * g + be

    def lrelu(x):
        return jnp.where(x > 0, x, 0.2 * x)

    h = lrelu(bn(z @ w1 + b1, g1, be1))
    h = lrelu(bn(h @ w2 + b2, g2, be2))
    h = lrelu(bn(h @ w3 + b3, g3, be3))
    return jnp.tanh(h @ w4 + b4)


if __name__ == "__main__":
    key = jax.random.PRNGKey(0)
    k_params, k_z = jax.random.split(key)

    params = init_params(k_params)
    pslab = pack_params(params)
    z = jax.random.normal(k_z, (8, 5), jnp.float32)   # batch=8, latent dim=5

    out = generator_forward(z, pslab)
    out = jax.block_until_ready(out)

    ref = reference_forward(z, params)
    assert out.shape == (8, 56), out.shape
    assert jnp.allclose(out, ref, atol=1e-5, rtol=1e-5), "mismatch vs reference"

    print("KERNEL_OK")
</pallas_src>

<mosaic_0001>
module attributes {stable_mosaic.version = 11 : i64} {
  func.func @_generator_kernel(%arg0: memref<8x8xf32, #tpu.memory_space<vmem>>, %arg1: memref<72x128xf32, #tpu.memory_space<vmem>>, %arg2: memref<8x128xf32, #tpu.memory_space<vmem>>) attributes {dimension_semantics = [], scalar_prefetch = 0 : i64, scratch_operands = 0 : i64, tpu.core_type = #tpu.core_type<tc>} {
    %c0 = arith.constant 0 : index
    %c0_0 = arith.constant 0 : index
    %0 = vector.load %arg1[%c0, %c0_0] : memref<72x128xf32, #tpu.memory_space<vmem>>, vector<8x8xf32>
    %c8 = arith.constant 8 : index
    %c0_1 = arith.constant 0 : index
    %1 = vector.load %arg1[%c8, %c0_1] : memref<72x128xf32, #tpu.memory_space<vmem>>, vector<8x16xf32>
    %c16 = arith.constant 16 : index
    %c0_2 = arith.constant 0 : index
    %2 = vector.load %arg1[%c16, %c0_2] : memref<72x128xf32, #tpu.memory_space<vmem>>, vector<16x32xf32>
    %c32 = arith.constant 32 : index
    %c0_3 = arith.constant 0 : index
    %3 = vector.load %arg1[%c32, %c0_3] : memref<72x128xf32, #tpu.memory_space<vmem>>, vector<32x128xf32>
    %c64 = arith.constant 64 : index
    %c0_4 = arith.constant 0 : index
    %4 = vector.load %arg1[%c64, %c0_4] : memref<72x128xf32, #tpu.memory_space<vmem>>, vector<8x128xf32>
    %5 = vector.extract_strided_slice %4 {offsets = [0, 0], sizes = [1, 8], strides = [1, 1]} : vector<8x128xf32> to vector<1x8xf32>
    %6 = vector.extract_strided_slice %4 {offsets = [1, 0], sizes = [1, 8], strides = [1, 1]} : vector<8x128xf32> to vector<1x8xf32>
    %7 = vector.extract_strided_slice %4 {offsets = [2, 0], sizes = [1, 16], strides = [1, 1]} : vector<8x128xf32> to vector<1x16xf32>
    %8 = vector.extract_strided_slice %4 {offsets = [3, 0], sizes = [1, 16], strides = [1, 1]} : vector<8x128xf32> to vector<1x16xf32>
    %9 = vector.extract_strided_slice %4 {offsets = [4, 0], sizes = [1, 32], strides = [1, 1]} : vector<8x128xf32> to vector<1x32xf32>
    %10 = vector.extract_strided_slice %4 {offsets = [5, 0], sizes = [1, 32], strides = [1, 1]} : vector<8x128xf32> to vector<1x32xf32>
    %11 = vector.extract_strided_slice %4 {offsets = [6, 0], sizes = [1, 128], strides = [1, 1]} : vector<8x128xf32> to vector<1x128xf32>
    %c0_5 = arith.constant 0 : index
    %c0_6 = arith.constant 0 : index
    %12 = vector.load %arg0[%c0_5, %c0_6] : memref<8x8xf32, #tpu.memory_space<vmem>>, vector<8x8xf32>
    %cst = arith.constant dense<0.000000e+00> : vector<8x8xf32>
    %13 = tpu.matmul %12, %0, %cst {dimension_numbers = #tpu.dot_dimension_numbers<[1], [0], [0], [1], [0, 0, 1, 1], [], []>} : vector<8x8xf32>, vector<8x8xf32>, vector<8x8xf32> -> vector<8x8xf32>
    %cst_7 = arith.constant dense<0.000000e+00> : vector<8xf32>
    %14 = vector.multi_reduction <add>, %13, %cst_7 [0] : vector<8x8xf32> to vector<8xf32>
    %15 = vector.shape_cast %14 : vector<8xf32> to vector<1x8xf32>
    %cst_8 = arith.constant 8.000000e+00 : f32
    %16 = vector.broadcast %cst_8 : f32 to vector<1x8xf32>
    %17 = arith.divf %15, %16 : vector<1x8xf32>
    %18 = vector.broadcast %17 : vector<1x8xf32> to vector<8x8xf32>
    %19 = arith.subf %13, %18 : vector<8x8xf32>
    %20 = arith.mulf %19, %19 : vector<8x8xf32>
    %cst_9 = arith.constant dense<0.000000e+00> : vector<8xf32>
    %21 = vector.multi_reduction <add>, %20, %cst_9 [0] : vector<8x8xf32> to vector<8xf32>
    %22 = vector.shape_cast %21 : vector<8xf32> to vector<1x8xf32>
    %cst_10 = arith.constant 8.000000e+00 : f32
    %23 = vector.broadcast %cst_10 : f32 to vector<1x8xf32>
    %24 = arith.divf %22, %23 : vector<1x8xf32>
    %cst_11 = arith.constant 8.000000e-01 : f32
    %25 = vector.broadcast %cst_11 : f32 to vector<1x8xf32>
    %26 = arith.addf %24, %25 : vector<1x8xf32>
    %27 = math.rsqrt %26 : vector<1x8xf32>
    %28 = arith.mulf %5, %27 : vector<1x8xf32>
    %29 = vector.broadcast %28 : vector<1x8xf32> to vector<8x8xf32>
    %30 = arith.mulf %19, %29 : vector<8x8xf32>
    %31 = vector.broadcast %6 : vector<1x8xf32> to vector<8x8xf32>
    %32 = arith.addf %30, %31 : vector<8x8xf32>
    %cst_12 = arith.constant 2.000000e-01 : f32
    %33 = vector.broadcast %cst_12 : f32 to vector<8x8xf32>
    %34 = arith.mulf %33, %32 : vector<8x8xf32>
    %35 = arith.maximumf %32, %34 : vector<8x8xf32>
    %cst_13 = arith.constant dense<0.000000e+00> : vector<8x16xf32>
    %36 = tpu.matmul %35, %1, %cst_13 {dimension_numbers = #tpu.dot_dimension_numbers<[1], [0], [0], [1], [0, 0, 1, 1], [], []>} : vector<8x8xf32>, vector<8x16xf32>, vector<8x16xf32> -> vector<8x16xf32>
    %cst_14 = arith.constant dense<0.000000e+00> : vector<16xf32>
    %37 = vector.multi_reduction <add>, %36, %cst_14 [0] : vector<8x16xf32> to vector<16xf32>
    %38 = vector.shape_cast %37 : vector<16xf32> to vector<1x16xf32>
    %cst_15 = arith.constant 8.000000e+00 : f32
    %39 = vector.broadcast %cst_15 : f32 to vector<1x16xf32>
    %40 = arith.divf %38, %39 : vector<1x16xf32>
    %41 = vector.broadcast %40 : vector<1x16xf32> to vector<8x16xf32>
    %42 = arith.subf %36, %41 : vector<8x16xf32>
    %43 = arith.mulf %42, %42 : vector<8x16xf32>
    %cst_16 = arith.constant dense<0.000000e+00> : vector<16xf32>
    %44 = vector.multi_reduction <add>, %43, %cst_16 [0] : vector<8x16xf32> to vector<16xf32>
    %45 = vector.shape_cast %44 : vector<16xf32> to vector<1x16xf32>
    %cst_17 = arith.constant 8.000000e+00 : f32
    %46 = vector.broadcast %cst_17 : f32 to vector<1x16xf32>
    %47 = arith.divf %45, %46 : vector<1x16xf32>
    %cst_18 = arith.constant 8.000000e-01 : f32
    %48 = vector.broadcast %cst_18 : f32 to vector<1x16xf32>
    %49 = arith.addf %47, %48 : vector<1x16xf32>
    %50 = math.rsqrt %49 : vector<1x16xf32>
    %51 = arith.mulf %7, %50 : vector<1x16xf32>
    %52 = vector.broadcast %51 : vector<1x16xf32> to vector<8x16xf32>
    %53 = arith.mulf %42, %52 : vector<8x16xf32>
    %54 = vector.broadcast %8 : vector<1x16xf32> to vector<8x16xf32>
    %55 = arith.addf %53, %54 : vector<8x16xf32>
    %cst_19 = arith.constant 2.000000e-01 : f32
    %56 = vector.broadcast %cst_19 : f32 to vector<8x16xf32>
    %57 = arith.mulf %56, %55 : vector<8x16xf32>
    %58 = arith.maximumf %55, %57 : vector<8x16xf32>
    %cst_20 = arith.constant dense<0.000000e+00> : vector<8x32xf32>
    %59 = tpu.matmul %58, %2, %cst_20 {dimension_numbers = #tpu.dot_dimension_numbers<[1], [0], [0], [1], [0, 0, 1, 1], [], []>} : vector<8x16xf32>, vector<16x32xf32>, vector<8x32xf32> -> vector<8x32xf32>
    %cst_21 = arith.constant dense<0.000000e+00> : vector<32xf32>
    %60 = vector.multi_reduction <add>, %59, %cst_21 [0] : vector<8x32xf32> to vector<32xf32>
    %61 = vector.shape_cast %60 : vector<32xf32> to vector<1x32xf32>
    %cst_22 = arith.constant 8.000000e+00 : f32
    %62 = vector.broadcast %cst_22 : f32 to vector<1x32xf32>
    %63 = arith.divf %61, %62 : vector<1x32xf32>
    %64 = vector.broadcast %63 : vector<1x32xf32> to vector<8x32xf32>
    %65 = arith.subf %59, %64 : vector<8x32xf32>
    %66 = arith.mulf %65, %65 : vector<8x32xf32>
    %cst_23 = arith.constant dense<0.000000e+00> : vector<32xf32>
    %67 = vector.multi_reduction <add>, %66, %cst_23 [0] : vector<8x32xf32> to vector<32xf32>
    %68 = vector.shape_cast %67 : vector<32xf32> to vector<1x32xf32>
    %cst_24 = arith.constant 8.000000e+00 : f32
    %69 = vector.broadcast %cst_24 : f32 to vector<1x32xf32>
    %70 = arith.divf %68, %69 : vector<1x32xf32>
    %cst_25 = arith.constant 8.000000e-01 : f32
    %71 = vector.broadcast %cst_25 : f32 to vector<1x32xf32>
    %72 = arith.addf %70, %71 : vector<1x32xf32>
    %73 = math.rsqrt %72 : vector<1x32xf32>
    %74 = arith.mulf %9, %73 : vector<1x32xf32>
    %75 = vector.broadcast %74 : vector<1x32xf32> to vector<8x32xf32>
    %76 = arith.mulf %65, %75 : vector<8x32xf32>
    %77 = vector.broadcast %10 : vector<1x32xf32> to vector<8x32xf32>
    %78 = arith.addf %76, %77 : vector<8x32xf32>
    %cst_26 = arith.constant 2.000000e-01 : f32
    %79 = vector.broadcast %cst_26 : f32 to vector<8x32xf32>
    %80 = arith.mulf %79, %78 : vector<8x32xf32>
    %81 = arith.maximumf %78, %80 : vector<8x32xf32>
    %cst_27 = arith.constant dense<0.000000e+00> : vector<8x128xf32>
    %82 = tpu.matmul %81, %3, %cst_27 {dimension_numbers = #tpu.dot_dimension_numbers<[1], [0], [0], [1], [0, 0, 1, 1], [], []>} : vector<8x32xf32>, vector<32x128xf32>, vector<8x128xf32> -> vector<8x128xf32>
    %83 = vector.broadcast %11 : vector<1x128xf32> to vector<8x128xf32>
    %84 = arith.addf %82, %83 : vector<8x128xf32>
    %85 = math.tanh %84 : vector<8x128xf32>
    %c0_28 = arith.constant 0 : index
    %c0_29 = arith.constant 0 : index
    %86 = vector.load %arg2[%c0_28, %c0_29] : memref<8x128xf32, #tpu.memory_space<vmem>>, vector<8x128xf32>
    tpu.vector_store %arg2[%c0_28, %c0_29], %85 {strides = array<i32>} : memref<8x128xf32, #tpu.memory_space<vmem>>, vector<8x128xf32>,
    return
  }
}

</mosaic_0001>

<llo_original>
// kernel: generator_forward.1
$region0: #{generator_forward.1}
  #allocation0 [shape = 'u32[]', space=smem, size = 0x4, offset = 0x4, fixed_abs, tag = 'smem constant byte address 0x4 - core index']
  #allocation1 [shape = 'u32[72,128]{1,0:T(1,128)}', space=vmem, size = 0x9000, scoped, tag = 'internal scratch']
  %s0 = inlined_call_operand.vmem [shape: f32[8,8], index: 0, kind: input, shape index: {}]
  %s1 = inlined_call_operand.hbm [shape: f32[72,128], index: 1, kind: input, shape index: {}]
  %s2 = inlined_call_operand.hbm [shape: f32[8,128], index: 2, kind: output, shape index: {}]
  %s3 = sld [smem:[#allocation0]]
  $region22: #{generator_forward.1} parent=0
    _
  %s5 = ssub.s32 1, %s3
  %s6 = scalar_select 0, %s5, %s3
  $region1: #{generator_forward.1} parent=0
    #allocation2 [shape = 'u8[36864]{0}', space=vmem, size = 0x9000, scoped, tag = 'input window, operand 1, single buffered']
    #allocation3 [shape = 's32[1]{0}', space=sflag, size = 0x4, scoped, tag = 'scoped memory for generator_forward.1']
    #allocation4 [shape = 's32[1]{0}', space=sflag, size = 0x4, scoped, tag = 'scoped memory for generator_forward.1']
    #allocation5 [shape = 'u8[4096]{0}', space=vmem, size = 0x1000, scoped, tag = 'output window, operand 0, single buffered']
    %7 = vsyncpa [#allocation3], 0
    %8 = vsyncpa [#allocation4], 0
    // Predicated region
    $region2: #{generator_forward.1} parent=1 // pred_check
      _
    $region3: #{generator_forward.1} parent=1 // pred_check_branch
      %10 = sbr.rel (0) target = $region5
    $region4: #{generator_forward.1} parent=1 // pred_region
      _
    $region5: #{generator_forward.1} parent=1 // pred_fallthru
      _
    // Predicated region
    $region6: #{generator_forward.1} parent=1 // pred_check
      _
    $region7: #{generator_forward.1} parent=1 // pred_check_branch
      %12 = sbr.rel (0) target = $region9
    $region8: #{generator_forward.1} parent=1 // pred_region
      %14 = vsyncadd [#allocation3], 0
      %s15 = sshll.u32 %s1, 4
      %s16 = int_to_ptr.hbm [resolvable:$true] %s15
      %s17 = sshll.u32 [#allocation2], 4
      %s18 = int_to_ptr.vmem [resolvable:$true] %s17
      %23 = dma.hbm_to_vmem [thread:$0]  %s16, 1152, %s18, [#allocation3], 128, 128, 8
    $region9: #{generator_forward.1} parent=1 // pred_fallthru
      _
    // Predicated region
    $region10: #{generator_forward.1} parent=1 // pred_check
      _
    $region11: #{generator_forward.1} parent=1 // pred_check_branch
      %25 = sbr.rel (0) target = $region13
    $region12: #{generator_forward.1} parent=1 // pred_region
      %27 = dma.done [#allocation3], 1152
    $region13: #{generator_forward.1} parent=1 // pred_fallthru
      _
    %v28 = vld [vmem:[#allocation2] sm:$0xff]
    %v29 = vld [vmem:[#allocation2 + $0x8] sm:$0xff]
    %v30 = vld [vmem:[#allocation2 + $0x10] sm:$0xff]
    %v31 = vld [vmem:[#allocation2 + $0x18] sm:$0xff]
    %v32 = vld [vmem:[#allocation2 + $0x20] sm:$0xff]
    %v33 = vld [vmem:[#allocation2 + $0x28] sm:$0xff]
    %v34 = vld [vmem:[#allocation2 + $0x30] sm:$0xff]
    %v35 = vld [vmem:[#allocation2 + $0x38] sm:$0xff]
    %v36 = vld [vmem:[#allocation2 + $0x40] sm:$0xff]
    %v37 = vld [vmem:[%s0] sm:$0xff]
    %vm38 = vcmask 64512
    %v40 = vsel %vm38, %v37, 0
    %42 = vmatpush.msra.mxu0 0.0
    %43 = vmatpush.msra.mxu0 0.0
    %44 = vmatpush.msra.mxu0 0.0
    %45 = vmatpush.msra.mxu0 0.0
    %46 = vmatpush.msra.mxu0 0.0
    %47 = vmatpush.msra.mxu0 0.0
    %48 = vmatpush.msra.mxu0 0.0
    %49 = vmatpush.msra.mxu0 0.0
    %50 = vmatpush.msra.mxu0 0.0
    %51 = vmatpush.msra.mxu0 0.0
    %52 = vmatpush.msra.mxu0 0.0
    %53 = vmatpush.msra.mxu0 0.0
    %54 = vmatpush.msra.mxu0 0.0
    %55 = vmatpush.msra.mxu0 0.0
    %56 = vmatpush.msra.mxu0 0.0
    %57 = vmatpush.msra.mxu0 %v28
    %58 = vmatmul.f32.gmra.mxu0 %v40
    %v59 = vpop.f32.mrf.mxu0
    %v60 = vadd.f32 0.0, %v59
    %61 = vdwg.mxu0
    %v62 = vsel %vm38, %v60, 0.0
    %v63 = vrot.slane %v62, 4
    %v64 = vadd.f32 %v62, %v63
    %v65 = vrot.slane %v64, 2
    %v66 = vadd.f32 %v64, %v65
    %v67 = vrot.slane %v66, 1
    %v68 = vadd.f32 %v66, %v67
    %v69 = vrcp.pop 8.0
    %v70 = vmul.f32 8.0, %v69
    %v71 = vsub.f32 1.0, %v70
    %v72 = vmul.f32 %v69, %v71
    %v73 = vadd.f32 %v69, %v72
    %vm74 = vweird.f32 %v69
    %v75 = vsel %vm74, %v69, %v73
    %v76 = vmul.f32 %v68, %v75
    %v77 = vsub.f32 %v60, %v76
    %v78 = vmul.f32 %v77, %v77
    %v79 = vsel %vm38, %v78, 0.0
    %v80 = vrot.slane %v79, 4
    %v81 = vadd.f32 %v79, %v80
    %v82 = vrot.slane %v81, 2
    %v83 = vadd.f32 %v81, %v82
    %v84 = vrot.slane %v83, 1
    %v85 = vadd.f32 %v83, %v84
    %v86 = vmul.f32 %v85, %v75
    %v87 = vadd.f32 %v86, 0.8
    %v88 = vrsqrt.pop %v87
    %v89 = vmul.f32 %v88, %v87
    %v90 = vmul.f32 %v89, %v88
    %v91 = vmul.f32 0.5, %v90
    %v92 = vsub.f32 1.5, %v91
    %v93 = vmul.f32 %v88, %v92
    %vm94 = vweird.f32 %v87
    %vm95 = vweird.f32 %v88
    %vm96 = vmor %vm94, %vm95
    %v97 = vsel %vm96, %v88, %v93
    %v98 = vmul.f32 %v36, %v97
    %v99 = vperm.slane %v98, 0
    %v100 = vmul.f32 %v77, %v99
    %v101 = vperm.slane %v36, 1
    %v102 = vadd.f32 %v100, %v101
    %v103 = vmul.f32 %v102, 0.2
    %v104 = vmax.f32 %v102, %v103
    %v106 = vsel %vm38, %v104, 0
    %108 = vmatpush.msra.mxu0 0.0
    %109 = vmatpush.msra.mxu0 0.0
    %110 = vmatpush.msra.mxu0 0.0
    %111 = vmatpush.msra.mxu0 0.0
    %112 = vmatpush.msra.mxu0 0.0
    %113 = vmatpush.msra.mxu0 0.0
    %114 = vmatpush.msra.mxu0 0.0
    %115 = vmatpush.msra.mxu0 0.0
    %116 = vmatpush.msra.mxu0 0.0
    %117 = vmatpush.msra.mxu0 0.0
    %118 = vmatpush.msra.mxu0 0.0
    %119 = vmatpush.msra.mxu0 0.0
    %120 = vmatpush.msra.mxu0 0.0
    %121 = vmatpush.msra.mxu0 0.0
    %122 = vmatpush.msra.mxu0 0.0
    %123 = vmatpush.msra.mxu0 %v29
    %124 = vmatmul.f32.gmra.mxu0 %v106
    %v125 = vpop.f32.mrf.mxu0
    %v126 = vadd.f32 0.0, %v125
    %127 = vdwg.mxu0
    %vm128 = vcmask 130048
    %v129 = vsel %vm128, %v126, 0.0
    %v130 = vrot.slane %v129, 4
    %v131 = vadd.f32 %v129, %v130
    %v132 = vrot.slane %v131, 2
    %v133 = vadd.f32 %v131, %v132
    %v134 = vrot.slane %v133, 1
    %v135 = vadd.f32 %v133, %v134
    %v136 = vmul.f32 %v135, %v75
    %v137 = vsub.f32 %v126, %v136
    %v138 = vmul.f32 %v137, %v137
    %v139 = vsel %vm128, %v138, 0.0
    %v140 = vrot.slane %v139, 4
    %v141 = vadd.f32 %v139, %v140
    %v142 = vrot.slane %v141, 2
    %v143 = vadd.f32 %v141, %v142
    %v144 = vrot.slane %v143, 1
    %v145 = vadd.f32 %v143, %v144
    %v146 = vmul.f32 %v145, %v75
    %v147 = vadd.f32 %v146, 0.8
    %v148 = vrsqrt.pop %v147
    %v149 = vmul.f32 %v148, %v147
    %v150 = vmul.f32 %v149, %v148
    %v151 = vmul.f32 0.5, %v150
    %v152 = vsub.f32 1.5, %v151
    %v153 = vmul.f32 %v148, %v152
    %vm154 = vweird.f32 %v147
    %vm155 = vweird.f32 %v148
    %vm156 = vmor %vm154, %vm155
    %v157 = vsel %vm156, %v148, %v153
    %v158 = vmul.f32 %v36, %v157
    %v159 = vperm.slane %v158, 2
    %v160 = vmul.f32 %v137, %v159
    %v161 = vperm.slane %v36, 3
    %v162 = vadd.f32 %v160, %v161
    %v163 = vmul.f32 %v162, 0.2
    %v164 = vmax.f32 %v162, %v163
    %v166 = vsel %vm128, %v164, 0
    %168 = vmatpush.msra.mxu0 0.0
    %169 = vmatpush.msra.mxu0 0.0
    %170 = vmatpush.msra.mxu0 0.0
    %171 = vmatpush.msra.mxu0 0.0
    %172 = vmatpush.msra.mxu0 0.0
    %173 = vmatpush.msra.mxu0 0.0
    %174 = vmatpush.msra.mxu0 0.0
    %175 = vmatpush.msra.mxu0 0.0
    %176 = vmatpush.msra.mxu0 0.0
    %177 = vmatpush.msra.mxu0 0.0
    %178 = vmatpush.msra.mxu0 0.0
    %179 = vmatpush.msra.mxu0 0.0
    %180 = vmatpush.msra.mxu0 0.0
    %181 = vmatpush.msra.mxu0 0.0
    %182 = vmatpush.msra.mxu0 %v31
    %183 = vmatpush.msra.mxu0 %v30
    %184 = vmatmul.f32.gmra.mxu0 %v166
    %v185 = vpop.f32.mrf.mxu0
    %v186 = vadd.f32 0.0, %v185
    %187 = vdwg.mxu0
    %vm188 = vcmask 261120
    %v189 = vsel %vm188, %v186, 0.0
    %v190 = vrot.slane %v189, 4
    %v191 = vadd.f32 %v189, %v190
    %v192 = vrot.slane %v191, 2
    %v193 = vadd.f32 %v191, %v192
    %v194 = vrot.slane %v193, 1
    %v195 = vadd.f32 %v193, %v194
    %v196 = vmul.f32 %v195, %v75
    %v197 = vsub.f32 %v186, %v196
    %v198 = vmul.f32 %v197, %v197
    %v199 = vsel %vm188, %v198, 0.0
    %v200 = vrot.slane %v199, 4
    %v201 = vadd.f32 %v199, %v200
    %v202 = vrot.slane %v201, 2
    %v203 = vadd.f32 %v201, %v202
    %v204 = vrot.slane %v203, 1
    %v205 = vadd.f32 %v203, %v204
    %v206 = vmul.f32 %v205, %v75
    %v207 = vadd.f32 %v206, 0.8
    %v208 = vrsqrt.pop %v207
    %v209 = vmul.f32 %v208, %v207
    %v210 = vmul.f32 %v209, %v208
    %v211 = vmul.f32 0.5, %v210
    %v212 = vsub.f32 1.5, %v211
    %v213 = vmul.f32 %v208, %v212
    %vm214 = vweird.f32 %v207
    %vm215 = vweird.f32 %v208
    %vm216 = vmor %vm214, %vm215
    %v217 = vsel %vm216, %v208, %v213
    %v218 = vmul.f32 %v36, %v217
    %v219 = vperm.slane %v218, 4
    %v220 = vmul.f32 %v197, %v219
    %v221 = vperm.slane %v36, 5
    %v222 = vadd.f32 %v220, %v221
    %v223 = vmul.f32 %v222, 0.2
    %v224 = vmax.f32 %v222, %v223
    %v225 = vperm.slane %v36, 6
    %v227 = vsel %vm188, %v224, 0
    %229 = vmatpush.msra.mxu0 0.0
    %230 = vmatpush.msra.mxu0 0.0
    %231 = vmatpush.msra.mxu0 0.0
    %232 = vmatpush.msra.mxu0 0.0
    %233 = vmatpush.msra.mxu0 0.0
    %234 = vmatpush.msra.mxu0 0.0
    %235 = vmatpush.msra.mxu0 0.0
    %236 = vmatpush.msra.mxu0 0.0
    %237 = vmatpush.msra.mxu0 0.0
    %238 = vmatpush.msra.mxu0 0.0
    %239 = vmatpush.msra.mxu0 0.0
    %240 = vmatpush.msra.mxu0 0.0
    %241 = vmatpush.msra.mxu0 %v35
    %242 = vmatpush.msra.mxu0 %v34
    %243 = vmatpush.msra.mxu0 %v33
    %244 = vmatpush.msra.mxu0 %v32
    %245 = vmatmul.f32.gmra.mxu0 %v227
    %v246 = vpop.f32.mrf.mxu0
    %v247 = vadd.f32 %v225, %v246
    %248 = vdwg.mxu0
    %v249 = vtanh.pop %v247
    %250 = vst [vmem:[#allocation5] sm:$0xff] %v249
    // Predicated region
    $region14: #{generator_forward.1} parent=1 // pred_check
      _
    $region15: #{generator_forward.1} parent=1 // pred_check_branch
      %252 = sbr.rel (0) target = $region17
    $region16: #{generator_forward.1} parent=1 // pred_region
      %254 = vsyncadd [#allocation4], 0
      %s256 = sshll.u32 [#allocation5], 4
      %s257 = int_to_ptr.vmem [resolvable:$true] %s256
      %s258 = sshll.u32 %s2, 4
      %s259 = int_to_ptr.hbm [resolvable:$true] %s258
      %261 = dma.vmem_to_hbm [thread:$0]  %s257, 128, %s259, [#allocation4]
    $region17: #{generator_forward.1} parent=1 // pred_fallthru
      _
    // Predicated region
    $region18: #{generator_forward.1} parent=1 // pred_check
      _
    $region19: #{generator_forward.1} parent=1 // pred_check_branch
      %263 = sbr.rel (0) target = $region21
    $region20: #{generator_forward.1} parent=1 // pred_region
      %265 = dma.done [#allocation4], 128
    $region21: #{generator_forward.1} parent=1 // pred_fallthru
      _
    %266 = vsyncpa [#allocation3], 1
    %267 = vsyncpa [#allocation4], 1

</llo_original>
